<compile_context>
chip_gen: v7x
topology: tpu7x:2x2x1
jax: 0.10.0
libtpu: 0.0.40
codegen_flags: <defaults>
</compile_context>

<pallas_src>
import functools

import jax
import jax.numpy as jnp
from jax import lax
from jax.experimental import pallas as pl
from jax.experimental.pallas import tpu as pltpu

LANES = 128
SUBLANES = 8
_BLOCK_BYTES_PER_INPUT = 4 * 1024 * 1024   # 4 MiB/input/step -> 16 MiB buffered
_VMEM_LIMIT_BYTES = 32 * 1024 * 1024       # explicit: > v5e's 16 MiB default


def _multiloss_block_kernel(x_ref, t_ref, out_ref, *, rows_in_last, grid_size):
    """One (block_rows, 128) tile -> per-block (2, 8, 128) partial sums."""
    block_rows, lanes = x_ref.shape
    sub = block_rows // SUBLANES

    x = x_ref[...].astype(jnp.float32)
    t = t_ref[...].astype(jnp.float32)

    # Numerically-stable BCE-with-logits: max(x,0) - x*t + log(1+exp(-|x|)).
    bce = jnp.maximum(x, 0.0) - x * t + jnp.log1p(jnp.exp(-jnp.abs(x)))
    sq = (x - t) * (x - t)

    def _reduce_and_store(bce_e, sq_e):
        # VPU-only partial reduce (sublane-group adds); the remaining (8,128)
        # cross-lane reduction is done once in the wrapper on a tiny array.
        out_ref[0, 0, :, :] = bce_e.reshape(sub, SUBLANES, lanes).sum(axis=0)
        out_ref[0, 1, :, :] = sq_e.reshape(sub, SUBLANES, lanes).sum(axis=0)

    if rows_in_last == block_rows:
        # Statically aligned: maskless kernel, no iota/compare/select at all.
        _reduce_and_store(bce, sq)
    else:
        def _store_masked():
            # Block-local row index only (int32-safe for any array size).
            row_ids = lax.broadcasted_iota(jnp.int32, (block_rows, lanes), 0)
            valid = row_ids < rows_in_last
            _reduce_and_store(jnp.where(valid, bce, 0.0),
                              jnp.where(valid, sq, 0.0))

        if grid_size == 1:
            _store_masked()
        else:
            is_last = pl.program_id(0) == grid_size - 1

            @pl.when(is_last)
            def _():
                _store_masked()

            @pl.when(jnp.logical_not(is_last))
            def _():
                _reduce_and_store(bce, sq)


def _bce_mse_sums_pallas(x2, t2, rows):
    """x2, t2: (rows, 128) arrays.  Returns (sum of BCE terms, sum of sq err)."""
    itemsize = max(x2.dtype.itemsize, t2.dtype.itemsize)
    max_block_rows = max(
        SUBLANES,
        (_BLOCK_BYTES_PER_INPUT // (LANES * itemsize)) // SUBLANES * SUBLANES)
    block_rows = min(max_block_rows,
                     ((rows + SUBLANES - 1) // SUBLANES) * SUBLANES)
    grid_size = pl.cdiv(rows, block_rows)
    rows_in_last = rows - (grid_size - 1) * block_rows  # static Python int

    kernel = functools.partial(_multiloss_block_kernel,
                               rows_in_last=rows_in_last,
                               grid_size=grid_size)

    partials = pl.pallas_call(
        kernel,
        out_shape=jax.ShapeDtypeStruct((grid_size, 2, SUBLANES, LANES),
                                       jnp.float32),
        grid=(grid_size,),
        in_specs=[pl.BlockSpec((block_rows, LANES), lambda i: (i, 0)),
                  pl.BlockSpec((block_rows, LANES), lambda i: (i, 0))],
        out_specs=pl.BlockSpec((1, 2, SUBLANES, LANES),
                               lambda i: (i, 0, 0, 0)),
        compiler_params=pltpu.CompilerParams(
            dimension_semantics=("parallel",),       # megacore-shardable on v7x
            vmem_limit_bytes=_VMEM_LIMIT_BYTES),
    )(x2, t2)

    bce_sum = jnp.sum(partials[:, 0])
    mse_sum = jnp.sum(partials[:, 1])
    return bce_sum, mse_sum


@functools.partial(jax.jit, static_argnames=("loss_names", "loss_weights"))
def multi_loss(logits, target,
               loss_names=("bce", "mse"),
               loss_weights=(1.0, 0.5)):
    """JAX/Pallas equivalent of MultiLoss.forward(logits, target)."""
    n = logits.size  # static Python int under jit
    x_flat = logits.reshape(-1)
    t_flat = target.reshape(-1)

    aligned = (n // LANES) * LANES
    tail = n - aligned

    bce_sum = jnp.float32(0.0)
    mse_sum = jnp.float32(0.0)

    if aligned > 0:
        rows = aligned // LANES
        if tail == 0:
            # Free reshape (bitcast) -> zero extra HBM traffic.
            x2 = x_flat.reshape(rows, LANES)
            t2 = t_flat.reshape(rows, LANES)
        else:
            # TODO(synk): this prefix slice copies ~n elements per input; a
            # manual-DMA 1D-block kernel would make the lane-misaligned case
            # fully zero-copy as well.
            x2 = lax.slice(x_flat, (0,), (aligned,)).reshape(rows, LANES)
            t2 = lax.slice(t_flat, (0,), (aligned,)).reshape(rows, LANES)
        b, m = _bce_mse_sums_pallas(x2, t2, rows)
        bce_sum = bce_sum + b
        mse_sum = mse_sum + m

    if tail > 0:
        # < 128 ragged elements: trivial pure-jnp reduction.
        xt = lax.slice(x_flat, (aligned,), (n,)).astype(jnp.float32)
        tt = lax.slice(t_flat, (aligned,), (n,)).astype(jnp.float32)
        bce_sum = bce_sum + jnp.sum(jnp.maximum(xt, 0.0) - xt * tt
                                    + jnp.log1p(jnp.exp(-jnp.abs(xt))))
        mse_sum = mse_sum + jnp.sum((xt - tt) * (xt - tt))

    inv_n = 1.0 / float(n)  # mean reduction (PyTorch default for both losses)
    raw_vals = (bce_sum * inv_n, mse_sum * inv_n)
    losses = {}
    for name, w, val in zip(loss_names, loss_weights, raw_vals):
        losses[name] = val * w
    losses["loss"] = sum(losses.values())
    return losses


def _reference(logits, target, weights=(1.0, 0.5)):
    x = logits.astype(jnp.float32)
    t = target.astype(jnp.float32)
    bce = jnp.mean(jnp.maximum(x, 0.0) - x * t + jnp.log1p(jnp.exp(-jnp.abs(x))))
    mse = jnp.mean((x - t) ** 2)
    out = {"bce": bce * weights[0], "mse": mse * weights[1]}
    out["loss"] = out["bce"] + out["mse"]
    return out


def _check(got, ref, label):
    g, r = float(got), float(ref)
    assert abs(g - r) <= 1e-5 + 1e-4 * abs(r), (label, g, r)


if __name__ == "__main__":
    key = jax.random.PRNGKey(0)
    k1, k2 = jax.random.split(key)

    # Primary demo: logits/target [B, C, H, W] = [2, 4, 16, 16] (lane-aligned,
    # single block, maskless fast path).
    logits = jax.random.normal(k1, (2, 4, 16, 16), dtype=jnp.float32)
    target = jax.random.uniform(k2, (2, 4, 16, 16), dtype=jnp.float32)

    losses = multi_loss(logits, target)
    jax.block_until_ready(losses["loss"])

    ref = _reference(logits, target)
    for name in ("bce", "mse", "loss"):
        _check(losses[name], ref[name], name)

    # Lane-misaligned shape: exercises the masked edge block + jnp ragged tail.
    k3, k4 = jax.random.split(k1)
    mis_logits = jax.random.normal(k3, (3, 5, 33, 47), dtype=jnp.float32)
    mis_target = jax.random.uniform(k4, (3, 5, 33, 47), dtype=jnp.float32)
    mis = multi_loss(mis_logits, mis_target)
    jax.block_until_ready(mis["loss"])
    mis_ref = _reference(mis_logits, mis_target)
    for name in ("bce", "mse", "loss"):
        _check(mis[name], mis_ref[name], "mis_" + name)

    # Multi-block aligned shape: exercises grid > 1, parallel semantics, and
    # the pl.when masked-last-block / unmasked-interior branches.
    k5, k6 = jax.random.split(k2)
    big_logits = jax.random.normal(k5, (2, 8, 256, 320), dtype=jnp.float32)
    big_target = jax.random.uniform(k6, (2, 8, 256, 320), dtype=jnp.float32)
    big = multi_loss(big_logits, big_target)
    jax.block_until_ready(big["loss"])
    big_ref = _reference(big_logits, big_target)
    for name in ("bce", "mse", "loss"):
        _check(big[name], big_ref[name], "big_" + name)

    print("KERNEL_OK")
</pallas_src>

<mosaic_0001>
module attributes {stable_mosaic.version = 11 : i64} {
  func.func @_multiloss_block_kernel(%arg0: i32, %arg1: memref<16x128xf32, #tpu.memory_space<vmem>>, %arg2: memref<16x128xf32, #tpu.memory_space<vmem>>, %arg3: memref<1x2x8x128xf32, #tpu.memory_space<vmem>>) attributes {dimension_semantics = [#tpu.dimension_semantics<parallel>], iteration_bounds = array<i64: 1>, scalar_prefetch = 0 : i64, scratch_operands = 0 : i64, tpu.core_type = #tpu.core_type<tc>, window_params = [{transform_indices = @transform_0, window_bounds = array<i64: 16, 128>}, {transform_indices = @transform_1, window_bounds = array<i64: 16, 128>}, {transform_indices = @transform_2, window_bounds = array<i64: 1, 2, 8, 128>}]} {
    %c0 = arith.constant 0 : index
    %c0_0 = arith.constant 0 : index
    %0 = vector.load %arg1[%c0, %c0_0] : memref<16x128xf32, #tpu.memory_space<vmem>>, vector<16x128xf32>
    %c0_1 = arith.constant 0 : index
    %c0_2 = arith.constant 0 : index
    %1 = vector.load %arg2[%c0_1, %c0_2] : memref<16x128xf32, #tpu.memory_space<vmem>>, vector<16x128xf32>
    %cst = arith.constant 0.000000e+00 : f32
    %2 = vector.broadcast %cst : f32 to vector<16x128xf32>
    %3 = arith.maximumf %0, %2 : vector<16x128xf32>
    %4 = arith.mulf %0, %1 : vector<16x128xf32>
    %5 = arith.subf %3, %4 : vector<16x128xf32>
    %6 = math.absf %0 : vector<16x128xf32>
    %cst_3 = arith.constant 0.000000e+00 : f32
    %7 = vector.broadcast %cst_3 : f32 to vector<16x128xf32>
    %8 = arith.subf %7, %6 : vector<16x128xf32>
    %9 = math.exp %8 : vector<16x128xf32>
    %10 = math.log1p %9 : vector<16x128xf32>
    %11 = arith.addf %5, %10 : vector<16x128xf32>
    %12 = arith.subf %0, %1 : vector<16x128xf32>
    %13 = arith.subf %0, %1 : vector<16x128xf32>
    %14 = arith.mulf %12, %13 : vector<16x128xf32>
    %15 = vector.shape_cast %11 : vector<16x128xf32> to vector<2x8x128xf32>
    %cst_4 = arith.constant dense<0.000000e+00> : vector<8x128xf32>
    %16 = vector.multi_reduction <add>, %15, %cst_4 [0] : vector<2x8x128xf32> to vector<8x128xf32>
    %c0_5 = arith.constant 0 : index
    %c0_6 = arith.constant 0 : index
    %c0_7 = arith.constant 0 : index
    %c0_8 = arith.constant 0 : index
    %17 = vector.load %arg3[%c0_5, %c0_6, %c0_7, %c0_8] : memref<1x2x8x128xf32, #tpu.memory_space<vmem>>, vector<1x1x8x128xf32>
    %18 = vector.shape_cast %17 : vector<1x1x8x128xf32> to vector<8x128xf32>
    %19 = vector.shape_cast %16 : vector<8x128xf32> to vector<1x1x8x128xf32>
    tpu.vector_store %arg3[%c0_5, %c0_6, %c0_7, %c0_8], %19 {strides = array<i32>} : memref<1x2x8x128xf32, #tpu.memory_space<vmem>>, vector<1x1x8x128xf32>,
    %20 = vector.shape_cast %14 : vector<16x128xf32> to vector<2x8x128xf32>
    %cst_9 = arith.constant dense<0.000000e+00> : vector<8x128xf32>
    %21 = vector.multi_reduction <add>, %20, %cst_9 [0] : vector<2x8x128xf32> to vector<8x128xf32>
    %c0_10 = arith.constant 0 : index
    %c1 = arith.constant 1 : index
    %c0_11 = arith.constant 0 : index
    %c0_12 = arith.constant 0 : index
    %22 = vector.load %arg3[%c0_10, %c1, %c0_11, %c0_12] : memref<1x2x8x128xf32, #tpu.memory_space<vmem>>, vector<1x1x8x128xf32>
    %23 = vector.shape_cast %22 : vector<1x1x8x128xf32> to vector<8x128xf32>
    %24 = vector.shape_cast %21 : vector<8x128xf32> to vector<1x1x8x128xf32>
    tpu.vector_store %arg3[%c0_10, %c1, %c0_11, %c0_12], %24 {strides = array<i32>} : memref<1x2x8x128xf32, #tpu.memory_space<vmem>>, vector<1x1x8x128xf32>,
    return
  }
  func.func @transform_0(%arg0: i32) -> (i32, i32) {
    %c0_i32 = arith.constant 0 : i32
    %c0_i32_0 = arith.constant 0 : i32
    return %arg0, %c0_i32 : i32, i32
  }
  func.func @transform_1(%arg0: i32) -> (i32, i32) {
    %c0_i32 = arith.constant 0 : i32
    %c0_i32_0 = arith.constant 0 : i32
    return %arg0, %c0_i32 : i32, i32
  }
  func.func @transform_2(%arg0: i32) -> (i32, i32, i32, i32) {
    %c0_i32 = arith.constant 0 : i32
    %c0_i32_0 = arith.constant 0 : i32
    %c0_i32_1 = arith.constant 0 : i32
    %c0_i32_2 = arith.constant 0 : i32
    return %arg0, %c0_i32, %c0_i32_0, %c0_i32_1 : i32, i32, i32, i32
  }
}

</mosaic_0001>

<llo_original>
// kernel: multi_loss.1
$region0: #{multi_loss.1}
  #allocation0 [shape = 'u32[]', space=smem, size = 0x4, offset = 0x4, fixed_abs, tag = 'smem constant byte address 0x4 - core index']
  #allocation1 [shape = 'u32[144,128]{1,0:T(1,128)}', space=vmem, size = 0x12000, scoped, tag = 'internal scratch']
  %s0 = inlined_call_operand.vmem [shape: f32[16,128], index: 0, kind: input, shape index: {}]
  %s1 = inlined_call_operand.vmem [shape: f32[16,128], index: 1, kind: input, shape index: {}]
  %s2 = inlined_call_operand.vmem [shape: f32[1,2,8,128], index: 2, kind: output, shape index: {}]
  %s3 = sld [smem:[#allocation0]]
  $region18: #{multi_loss.1} parent=0
    _
  %s5 = ssub.s32 1, %s3
  %s6 = scalar_select 0, %s5, %s3
  // Predicated region
  $region2: #{multi_loss.1} parent=0 // pred_check
    _
  $region3: #{multi_loss.1} parent=0 // pred_check_branch
    %8 = sbr.rel (0) target = $region5
  $region4: #{multi_loss.1} parent=0 // pred_region
    _
  $region5: #{multi_loss.1} parent=0 // pred_fallthru
    _
  // Predicated region
  $region6: #{multi_loss.1} parent=0 // pred_check
    _
  $region7: #{multi_loss.1} parent=0 // pred_check_branch
    %10 = sbr.rel (0) target = $region9
  $region8: #{multi_loss.1} parent=0 // pred_region
    _
  $region9: #{multi_loss.1} parent=0 // pred_fallthru
    _
  %v11 = vld [vmem:[%s0] sm:$0xff]
  %v12 = vld [vmem:[%s0 + $0x8] sm:$0xff]
  %v13 = vld [vmem:[%s1] sm:$0xff]
  %v14 = vld [vmem:[%s1 + $0x8] sm:$0xff]
  %v15 = vmax.f32 %v11, 0.0
  %v16 = vmax.f32 %v12, 0.0
  %v17 = vmul.f32 %v11, %v13
  %v18 = vmul.f32 %v12, %v14
  %v19 = vsub.f32 %v15, %v17
  %v20 = vsub.f32 %v16, %v18
  %v21 = vand.u32 2147483647, %v11
  %v22 = vand.u32 2147483647, %v12
  %v23 = vsub.f32 0.0, %v21
  %v24 = vsub.f32 0.0, %v22
  %v25 = vmul.f32 %v23, 1.442695
  %v26 = vpow.pop %v25
  %v27 = vmul.f32 %v24, 1.442695
  %v28 = vpow.pop %v27
  %v29 = vadd.f32 %v26, 1.0
  %v30 = vlog2.pop %v29
  %v31 = vmul.f32 %v30, 0.6931472
  %v32 = vmul.f32 -0.5, %v26
  %v33 = vadd.f32 %v32, 1.0
  %v34 = vmul.f32 %v33, %v26
  %v35 = vand.u32 2147483647, %v26
  %vm36 = vcmp.lt.f32.partialorder %v35, 0.0004427343
  %v37 = vsel %vm36, %v34, %v31
  %v38 = vadd.f32 %v28, 1.0
  %v39 = vlog2.pop %v38
  %v40 = vmul.f32 %v39, 0.6931472
  %v41 = vmul.f32 -0.5, %v28
  %v42 = vadd.f32 %v41, 1.0
  %v43 = vmul.f32 %v42, %v28
  %v44 = vand.u32 2147483647, %v28
  %vm45 = vcmp.lt.f32.partialorder %v44, 0.0004427343
  %v46 = vsel %vm45, %v43, %v40
  %v47 = vadd.f32 %v19, %v37
  %v48 = vadd.f32 %v20, %v46
  %v49 = vsub.f32 %v11, %v13
  %v50 = vsub.f32 %v12, %v14
  %v51 = vmul.f32 %v49, %v49
  %v52 = vmul.f32 %v50, %v50
  %v53 = vadd.f32 %v47, %v48
  %54 = vst [vmem:[%s2] sm:$0xff] %v53
  %v55 = vadd.f32 %v51, %v52
  %s56 = scalar_lea.vmem %s2, 8
  %57 = vst [vmem:[%s56] sm:$0xff] %v55
  // Predicated region
  $region10: #{multi_loss.1} parent=0 // pred_check
    _
  $region11: #{multi_loss.1} parent=0 // pred_check_branch
    %59 = sbr.rel (0) target = $region13
  $region12: #{multi_loss.1} parent=0 // pred_region
    _
  $region13: #{multi_loss.1} parent=0 // pred_fallthru
    _
  // Predicated region
  $region14: #{multi_loss.1} parent=0 // pred_check
    _
  $region15: #{multi_loss.1} parent=0 // pred_check_branch
    %61 = sbr.rel (0) target = $region17
  $region16: #{multi_loss.1} parent=0 // pred_region
    _
  $region17: #{multi_loss.1} parent=0 // pred_fallthru
    _

</llo_original>
